<compile_context>
chip_gen: v7x
topology: tpu7x:2x2x1
jax: 0.10.0
libtpu: 0.0.40
codegen_flags: <defaults>
</compile_context>

<pallas_src>
import functools

import jax
import jax.numpy as jnp
import numpy as np
from jax.experimental import pallas as pl
from jax.experimental.pallas import tpu as pltpu

# Fixed-point configuration (QuantizedConvolution width / frac-width params).
DATA_W, DATA_FW = 16, 8
WEIGHT_W, WEIGHT_FW = 16, 8
BIAS_W, BIAS_FW = 16, 8
OUT_W, OUT_FW = 16, 4

# int16 patch codes are exact only for data widths <= 16 bits.
_PATCH_I16 = DATA_W <= 16


def fxp_quantize(x, width, frac_width):
    """Fake fixed-point quantization: clamp(round(x * 2^f)) / 2^f."""
    scale = 2.0 ** frac_width
    maxv = 2.0 ** (width - 1) - 1.0
    minv = -(2.0 ** (width - 1))
    return jnp.clip(jnp.round(x * scale), minv, maxv) / scale


def fxp_codes_i16(x, width, frac_width):
    """Fixed-point *codes* clamp(round(x * 2^f)) as int16 (exact for width<=16)."""
    scale = 2.0 ** frac_width
    maxv = 2.0 ** (width - 1) - 1.0
    minv = -(2.0 ** (width - 1))
    return jnp.clip(jnp.round(x * scale), minv, maxv).astype(jnp.int16)


def _round_up(v, m):
    return (v + m - 1) // m * m


def _patch_embed_kernel(x_ref, w_ref, b_ref, o_ref):
    # x_ref: (1, TM, K_pad)  int16 patch codes (value = code * 2^-DATA_FW)
    #                        (or f32 fxp values when DATA_W > 16)
    # w_ref: (K_pad, E)      f32 pre-quantized weight, pre-scaled by 2^-DATA_FW
    # b_ref: (1, E)          f32 pre-quantized bias
    # o_ref: (1, TM, E)      f32 quantized output tokens (unpadded E)
    x = x_ref[0].astype(jnp.float32)
    acc = jnp.dot(x, w_ref[...], preferred_element_type=jnp.float32)
    acc = acc + b_ref[...]
    o_ref[0] = fxp_quantize(acc, OUT_W, OUT_FW).astype(o_ref.dtype)


def im2col_nchw(x, kh, kw, stride, pad):
    """[N,C,H,W] -> patches [N, Ho*Wo, C*kh*kw] (feature order: c-major, then kh, kw).

    Works on the (half-width) int16 code array, so the XLA-side materialization
    of the kh*kw/stride^2-expanded data moves half the bytes of the f32 version.
    """
    N, C, H, W = x.shape
    xp = jnp.pad(x, ((0, 0), (0, 0), (pad, pad), (pad, pad)))
    Ho = (H + 2 * pad - kh) // stride + 1
    Wo = (W + 2 * pad - kw) // stride + 1
    cols = []
    for i in range(kh):
        for j in range(kw):
            cols.append(
                xp[:, :,
                   i:i + (Ho - 1) * stride + 1:stride,
                   j:j + (Wo - 1) * stride + 1:stride])
    p = jnp.stack(cols, axis=0)                 # [kh*kw, N, C, Ho, Wo]
    p = jnp.transpose(p, (1, 3, 4, 2, 0))       # [N, Ho, Wo, C, kh*kw]
    return p.reshape(N, Ho * Wo, C * kh * kw), Ho, Wo


def _per_step_bytes(tm, k_pad, e, x_itemsize):
    """Honest pipelined VMEM working set: 2 buffers for *every* operand
    (Pallas double-buffers by default, including the constant-index weight)."""
    return (2 * tm * k_pad * x_itemsize          # patch tile, double-buffered
            + 2 * tm * e * 4                     # output tile, double-buffered
            + 2 * k_pad * e * 4                  # resident weight, 2 buffers
            + 2 * 8 * max(e, 128) * 4)           # bias (sublane/lane padded)


def _choose_tm(n, m, k_pad, e, x_itemsize, budget_bytes=40 * 1024 * 1024):
    """Largest M-tile (multiple of 16, <=1024) whose working set fits budget."""
    candidates = [1024, 768, 512, 384, 256, 128, 64, 32, 16]
    m_cap = _round_up(m, 16)
    if n == 1 and m > 16:
        # v7x has 2 TensorCores; with a single batch, make sure the M axis
        # provides >= 2 "parallel" grid tiles so both cores get work.
        candidates = [t for t in candidates if t < m] or [16]
    for tm in candidates:
        if tm > m_cap:
            continue
        if _per_step_bytes(tm, k_pad, e, x_itemsize) <= budget_bytes:
            return tm
    return 16


@functools.partial(jax.jit, static_argnums=(3, 4))
def _q_overlap_patch_embed_impl(x, weight, bias, patch_size, stride):
    N, C, H, W = x.shape
    E = weight.shape[0]
    kh = kw = patch_size
    pad = patch_size // 2

    # Quantize the (un-duplicated) input ONCE.  With DATA_W <= 16 the patches
    # are int16 codes (exact); the 2^-DATA_FW scale is folded into the weight.
    if _PATCH_I16:
        xq = fxp_codes_i16(x, DATA_W, DATA_FW)
        w_scale = 2.0 ** (-DATA_FW)
        x_itemsize = 2
    else:
        xq = fxp_quantize(x, DATA_W, DATA_FW)
        w_scale = 1.0
        x_itemsize = 4

    patches, Ho, Wo = im2col_nchw(xq, kh, kw, stride, pad)
    M = Ho * Wo
    K = C * kh * kw

    # Only the contraction axis K is lane-padded (to 128); M is padded to the
    # tile size so every *input* block is in bounds.  Output stays unpadded.
    K_pad = _round_up(K, 128)
    TM = _choose_tm(N, M, K_pad, E, x_itemsize)
    grid_m = -(-M // TM)                         # cdiv
    M_pad = grid_m * TM

    patches = jnp.pad(patches, ((0, 0), (0, M_pad - M), (0, K_pad - K)))

    # Parameter glue: quantize weight / bias, reshape for matmul, fold scale.
    wq = fxp_quantize(weight, WEIGHT_W, WEIGHT_FW).reshape(E, K).T * w_scale
    wq = jnp.pad(wq, ((0, K_pad - K), (0, 0)))                     # (K_pad, E)
    bq = fxp_quantize(bias, BIAS_W, BIAS_FW).reshape(1, E)         # (1, E)

    # Explicit VMEM limit: per_step already includes all pipeline buffers;
    # add headroom for compiler scratch, cap at 48 MiB (fits v7x's 64 MiB).
    per_step = _per_step_bytes(TM, K_pad, E, x_itemsize)
    vmem_limit = int(min(48 * 1024 * 1024,
                         max(32 * 1024 * 1024, per_step + 8 * 1024 * 1024)))

    out = pl.pallas_call(
        _patch_embed_kernel,
        # Unpadded output: last M block's out-of-range rows are dropped by
        # Pallas; no post-kernel slice copy is needed.
        out_shape=jax.ShapeDtypeStruct((N, M, E), x.dtype),
        grid_spec=pltpu.PrefetchScalarGridSpec(
            num_scalar_prefetch=0,
            grid=(N, grid_m),
            in_specs=[
                pl.BlockSpec((1, TM, K_pad), lambda b, m: (b, m, 0)),
                # Weight / bias blocks have a constant index -> stay resident.
                pl.BlockSpec((K_pad, E), lambda b, m: (0, 0)),
                pl.BlockSpec((1, E), lambda b, m: (0, 0)),
            ],
            out_specs=pl.BlockSpec((1, TM, E), lambda b, m: (b, m, 0)),
        ),
        compiler_params=pltpu.CompilerParams(
            dimension_semantics=("parallel", "parallel"),
            vmem_limit_bytes=vmem_limit),
    )(patches, wq, bq)

    return out


def q_overlap_patch_embed(x, weight, bias, patch_size=7, stride=4):
    """Forward of QOverlapPatchEmbed.  Returns (tokens [N, Ho*Wo, E], Ho, Wo)."""
    N, C, H, W = x.shape
    pad = patch_size // 2
    Ho = (H + 2 * pad - patch_size) // stride + 1
    Wo = (W + 2 * pad - patch_size) // stride + 1
    out = _q_overlap_patch_embed_impl(x, weight, bias, patch_size, stride)
    return out, Ho, Wo


def reference(x, weight, bias, patch_size=7, stride=4):
    """Pure-JAX reference mirroring the PyTorch module semantics."""
    pad = patch_size // 2
    xq = fxp_quantize(x, DATA_W, DATA_FW)
    wq = fxp_quantize(weight, WEIGHT_W, WEIGHT_FW)
    bq = fxp_quantize(bias, BIAS_W, BIAS_FW)
    y = jax.lax.conv_general_dilated(
        xq, wq,
        window_strides=(stride, stride),
        padding=((pad, pad), (pad, pad)),
        dimension_numbers=("NCHW", "OIHW", "NCHW"))
    y = y + bq[None, :, None, None]
    y = fxp_quantize(y, OUT_W, OUT_FW)
    N, E, Ho, Wo = y.shape
    y = y.reshape(N, E, Ho * Wo).transpose(0, 2, 1)  # flatten(2).transpose(1,2)
    return y, Ho, Wo


if __name__ == "__main__":
    # Small shapes consistent with the module's forward:
    # batch=2, in_chans=4, img_size=16, embed_dim=32, patch_size=7, stride=4.
    batch, in_chans, img_size = 2, 4, 16
    embed_dim, patch_size, stride = 32, 7, 4

    key = jax.random.PRNGKey(0)
    k1, k2, k3 = jax.random.split(key, 3)
    x = jax.random.normal(k1, (batch, in_chans, img_size, img_size), jnp.float32)
    weight = 0.1 * jax.random.normal(
        k2, (embed_dim, in_chans, patch_size, patch_size), jnp.float32)
    bias = 0.1 * jax.random.normal(k3, (embed_dim,), jnp.float32)

    out, H, W = q_overlap_patch_embed(x, weight, bias, patch_size, stride)
    out = jax.block_until_ready(out)

    ref, Hr, Wr = reference(x, weight, bias, patch_size, stride)
    assert (H, W) == (Hr, Wr) == (img_size // stride, img_size // stride)
    assert out.shape == (batch, H * W, embed_dim)
    np.testing.assert_allclose(np.asarray(out), np.asarray(ref), atol=1e-5, rtol=0)

    print("KERNEL_OK")
</pallas_src>

<mosaic_0001>
module attributes {stable_mosaic.version = 11 : i64} {
  func.func @_patch_embed_kernel(%arg0: i32, %arg1: i32, %arg2: memref<1x16x256xi16, #tpu.memory_space<vmem>>, %arg3: memref<256x32xf32, #tpu.memory_space<vmem>>, %arg4: memref<1x32xf32, #tpu.memory_space<vmem>>, %arg5: memref<1x16x32xf32, #tpu.memory_space<vmem>>) attributes {dimension_semantics = [#tpu.dimension_semantics<parallel>, #tpu.dimension_semantics<parallel>], iteration_bounds = array<i64: 2, 1>, scalar_prefetch = 0 : i64, scratch_operands = 0 : i64, tpu.core_type = #tpu.core_type<tc>, window_params = [{transform_indices = @transform_0, window_bounds = array<i64: 1, 16, 256>}, {pipeline_mode = #tpu.pipeline_mode<synchronous>, transform_indices = @transform_1, window_bounds = array<i64: 256, 32>}, {pipeline_mode = #tpu.pipeline_mode<synchronous>, transform_indices = @transform_2, window_bounds = array<i64: 1, 32>}, {transform_indices = @transform_3, window_bounds = array<i64: 1, 16, 32>}]} {
    %c0 = arith.constant 0 : index
    %c0_0 = arith.constant 0 : index
    %c0_1 = arith.constant 0 : index
    %0 = vector.load %arg2[%c0, %c0_0, %c0_1] : memref<1x16x256xi16, #tpu.memory_space<vmem>>, vector<1x16x256xi16>
    %1 = vector.shape_cast %0 : vector<1x16x256xi16> to vector<16x256xi16>
    %2 = arith.sitofp %1 : vector<16x256xi16> to vector<16x256xf32>
    %c0_2 = arith.constant 0 : index
    %c0_3 = arith.constant 0 : index
    %3 = vector.load %arg3[%c0_2, %c0_3] : memref<256x32xf32, #tpu.memory_space<vmem>>, vector<256x32xf32>
    %cst = arith.constant dense<0.000000e+00> : vector<16x32xf32>
    %4 = tpu.matmul %2, %3, %cst {dimension_numbers = #tpu.dot_dimension_numbers<[1], [0], [0], [1], [0, 0, 1, 1], [], []>} : vector<16x256xf32>, vector<256x32xf32>, vector<16x32xf32> -> vector<16x32xf32>
    %c0_4 = arith.constant 0 : index
    %c0_5 = arith.constant 0 : index
    %5 = vector.load %arg4[%c0_4, %c0_5] : memref<1x32xf32, #tpu.memory_space<vmem>>, vector<1x32xf32>
    %6 = vector.broadcast %5 : vector<1x32xf32> to vector<16x32xf32>
    %7 = arith.addf %4, %6 : vector<16x32xf32>
    %cst_6 = arith.constant 1.600000e+01 : f32
    %8 = vector.broadcast %cst_6 : f32 to vector<16x32xf32>
    %9 = arith.mulf %7, %8 : vector<16x32xf32>
    %10 = math.roundeven %9 : vector<16x32xf32>
    %cst_7 = arith.constant -3.276800e+04 : f32
    %cst_8 = arith.constant 3.276700e+04 : f32
    %11 = vector.broadcast %cst_7 : f32 to vector<16x32xf32>
    %12 = arith.maximumf %11, %10 : vector<16x32xf32>
    %13 = vector.broadcast %cst_8 : f32 to vector<16x32xf32>
    %14 = arith.minimumf %13, %12 : vector<16x32xf32>
    %cst_9 = arith.constant 1.600000e+01 : f32
    %15 = vector.broadcast %cst_9 : f32 to vector<16x32xf32>
    %16 = arith.divf %14, %15 : vector<16x32xf32>
    %c0_10 = arith.constant 0 : index
    %c0_11 = arith.constant 0 : index
    %c0_12 = arith.constant 0 : index
    %17 = vector.load %arg5[%c0_10, %c0_11, %c0_12] : memref<1x16x32xf32, #tpu.memory_space<vmem>>, vector<1x16x32xf32>
    %18 = vector.shape_cast %17 : vector<1x16x32xf32> to vector<16x32xf32>
    %19 = vector.shape_cast %16 : vector<16x32xf32> to vector<1x16x32xf32>
    tpu.vector_store %arg5[%c0_10, %c0_11, %c0_12], %19 {strides = array<i32>} : memref<1x16x32xf32, #tpu.memory_space<vmem>>, vector<1x16x32xf32>,
    return
  }
  func.func @transform_0(%arg0: i32, %arg1: i32) -> (i32, i32, i32) {
    %c0_i32 = arith.constant 0 : i32
    %c0_i32_0 = arith.constant 0 : i32
    return %arg0, %arg1, %c0_i32 : i32, i32, i32
  }
  func.func @transform_1(%arg0: i32, %arg1: i32) -> (i32, i32) {
    %c0_i32 = arith.constant 0 : i32
    %c0_i32_0 = arith.constant 0 : i32
    %c0_i32_1 = arith.constant 0 : i32
    return %c0_i32, %c0_i32_0 : i32, i32
  }
  func.func @transform_2(%arg0: i32, %arg1: i32) -> (i32, i32) {
    %c0_i32 = arith.constant 0 : i32
    %c0_i32_0 = arith.constant 0 : i32
    %c0_i32_1 = arith.constant 0 : i32
    return %c0_i32, %c0_i32_0 : i32, i32
  }
  func.func @transform_3(%arg0: i32, %arg1: i32) -> (i32, i32, i32) {
    %c0_i32 = arith.constant 0 : i32
    %c0_i32_0 = arith.constant 0 : i32
    return %arg0, %arg1, %c0_i32 : i32, i32, i32
  }
}

</mosaic_0001>

<llo_original>
// kernel: _q_overlap_patch_embed_impl.1
$region0: #{_q_overlap_patch_embed_impl.1}
  #allocation0 [shape = 'u32[]', space=smem, size = 0x4, offset = 0x4, fixed_abs, tag = 'smem constant byte address 0x4 - core index']
  #allocation1 [shape = 'u32[144,128]{1,0:T(1,128)}', space=vmem, size = 0x12000, scoped, tag = 'internal scratch']
  %s0 = inlined_call_operand.vmem [shape: s16[2,16,256], index: 0, kind: input, shape index: {}]
  %s1 = inlined_call_operand.vmem [shape: f32[256,32], index: 1, kind: input, shape index: {}]
  %s2 = inlined_call_operand.vmem [shape: f32[1,32], index: 2, kind: input, shape index: {}]
  %s3 = inlined_call_operand.hbm [shape: f32[2,16,32], index: 3, kind: output, shape index: {}]
  %s4 = sld [smem:[#allocation0]]
  $region45: #{_q_overlap_patch_embed_impl.1} parent=0
    _
  %s6 = ssub.s32 1, %s4
  %s7 = scalar_select 0, %s6, %s4
  $region1: #{_q_overlap_patch_embed_impl.1} parent=0
    #allocation2 [shape = 'u8[16384]{0}', space=vmem, size = 0x4000, scoped, tag = 'output window, operand 0']
    #allocation3 [shape = 's32[2]{0}', space=sflag, size = 0x8, scoped, tag = 'scoped memory for _q_overlap_patch_embed_impl.1']
    %8 = vsyncpa [#allocation3], 0
    %s9 = scalar_lea.sflag [#allocation3], 1
    %10 = vsyncpa %s9, 0
    loop: start=0, step=1, limit=4
    $region2: #{_q_overlap_patch_embed_impl.1} parent=1 // loop_pre_header
      _
    $region3: #{_q_overlap_patch_embed_impl.1} parent=1 // loop_header
      %s12 = sphi 0, %s16
      %p13 = scmp.ge.s32.totalorder %s12, 4
      %s19 = sphi 0, %s31
      %s20 = sphi 0, %s27
      %s21 = sphi 0, %s19
      %s22 = sphi 0, %s20
      %s23 = sphi 0, %s21
      %s24 = sphi 0, %s22
      %s36 = sphi 0, %s38
      %s39 = sphi 0, %s36
      %s40 = sphi 0, %s39
      %s56 = sphi 0, %s40
      %s60 = sphi 0, %s60
      %s62 = sphi 0, %s60
      %s63 = sphi 0, %s62
      %s77 = sphi 0, %s63
      %s81 = sphi 0, %s81
      %s83 = sphi 0, %s81
      %s84 = sphi 0, %s83
      %s98 = sphi 0, %s84
      %s106 = sphi 0, %s108
      %s109 = sphi 0, %s106
      %s110 = sphi 0, %s109
      %s126 = sphi 0, %s110
    $region4: #{_q_overlap_patch_embed_impl.1} parent=1 // loop_header_branch
      %15 = sbr.rel (%p13) target = $region8
    $region5: #{_q_overlap_patch_embed_impl.1} parent=1 // loop_body
      %s17 = ssub.s32 %s12, 1
      %s18 = ssub.s32 %s12, 2
      %s25 = sadd.s32 1, %s20
      %p26 = scmp.ge.s32.totalorder %s25, 1
      %s27 = scalar_select %p26, 0, %s25
      %s28 = sadd.s32 1, %s19
      %s29 = scalar_select %p26, %s28, %s19
      %p30 = scmp.ge.s32.totalorder %s29, 2
      %s31 = scalar_select %p30, 0, %s29
      %s32 = ssub.s32 %s19, %s31
      %s33 = ssub.s32 %s20, %s27
      %s34 = sor.u32 %s32, %s33
      %p35 = scmp.eq.s32.totalorder %s34, 0
      %s37 = sadd.s32 %s36, 1
      %s38 = scalar_select %p35, %s36, %s37
      %p41 = pneg %p35
      %p42 = scmp.eq.s32.totalorder %s12, 1
      %p43 = por %p41, %p42
      %p44 = scmp.ne.s32.totalorder %s36, %s39
      %p45 = scmp.eq.s32.totalorder %s12, 0
      %p46 = por %p44, %p45
      %p47 = scmp.ne.s32.totalorder %s36, %s39
      %p48 = scmp.eq.s32.totalorder %s17, 1
      %p49 = por %p47, %p48
      %p50 = scmp.ne.s32.totalorder %s39, %s40
      %p51 = scmp.eq.s32.totalorder %s17, 0
      %p52 = por %p50, %p51
      %p53 = scmp.ne.s32.totalorder %s39, %s40
      %p54 = scmp.eq.s32.totalorder %s18, 1
      %p55 = por %p53, %p54
      %p57 = scmp.ne.s32.totalorder %s40, %s56
      %p58 = scmp.eq.s32.totalorder %s18, 0
      %p59 = por %p57, %p58
      %s61 = sadd.s32 %s60, 1
      %p64 = scmp.eq.s32.totalorder %s12, 1
      %p65 = scmp.ne.s32.totalorder %s60, %s62
      %p66 = scmp.eq.s32.totalorder %s12, 0
      %p67 = por %p65, %p66
      %p68 = scmp.ne.s32.totalorder %s60, %s62
      %p69 = scmp.eq.s32.totalorder %s17, 1
      %p70 = por %p68, %p69
      %p71 = scmp.ne.s32.totalorder %s62, %s63
      %p72 = scmp.eq.s32.totalorder %s17, 0
      %p73 = por %p71, %p72
      %p74 = scmp.ne.s32.totalorder %s62, %s63
      %p75 = scmp.eq.s32.totalorder %s18, 1
      %p76 = por %p74, %p75
      %p78 = scmp.ne.s32.totalorder %s63, %s77
      %p79 = scmp.eq.s32.totalorder %s18, 0
      %p80 = por %p78, %p79
      %s82 = sadd.s32 %s81, 1
      %p85 = scmp.eq.s32.totalorder %s12, 1
      %p86 = scmp.ne.s32.totalorder %s81, %s83
      %p87 = scmp.eq.s32.totalorder %s12, 0
      %p88 = por %p86, %p87
      %p89 = scmp.ne.s32.totalorder %s81, %s83
      %p90 = scmp.eq.s32.totalorder %s17, 1
      %p91 = por %p89, %p90
      %p92 = scmp.ne.s32.totalorder %s83, %s84
      %p93 = scmp.eq.s32.totalorder %s17, 0
      %p94 = por %p92, %p93
      %p95 = scmp.ne.s32.totalorder %s83, %s84
      %p96 = scmp.eq.s32.totalorder %s18, 1
      %p97 = por %p95, %p96
      %p99 = scmp.ne.s32.totalorder %s84, %s98
      %p100 = scmp.eq.s32.totalorder %s18, 0
      %p101 = por %p99, %p100
      %s102 = ssub.s32 %s19, %s31
      %s103 = ssub.s32 %s20, %s27
      %s104 = sor.u32 %s102, %s103
      %p105 = scmp.eq.s32.totalorder %s104, 0
      %s107 = sadd.s32 %s106, 1
      %s108 = scalar_select %p105, %s106, %s107
      %p111 = pneg %p105
      %p112 = scmp.eq.s32.totalorder %s12, 1
      %p113 = por %p111, %p112
      %p114 = scmp.ne.s32.totalorder %s106, %s109
      %p115 = scmp.eq.s32.totalorder %s12, 0
      %p116 = por %p114, %p115
      %p117 = scmp.ne.s32.totalorder %s106, %s109
      %p118 = scmp.eq.s32.totalorder %s17, 1
      %p119 = por %p117, %p118
      %p120 = scmp.ne.s32.totalorder %s109, %s110
      %p121 = scmp.eq.s32.totalorder %s17, 0
      %p122 = por %p120, %p121
      %p123 = scmp.ne.s32.totalorder %s109, %s110
      %p124 = scmp.eq.s32.totalorder %s18, 1
      %p125 = por %p123, %p124
      %p127 = scmp.ne.s32.totalorder %s110, %s126
      %p128 = scmp.eq.s32.totalorder %s18, 0
      %p129 = por %p127, %p128
      %p130 = scmp.le.s32.totalorder 1, %s12
      %p131 = scmp.lt.s32.totalorder %s12, 3
      %p132 = pnand %p130, %p131
      %p133 = pneg %p132
      // Predicated region
      $region9: #{_q_overlap_patch_embed_impl.1} parent=5 // pred_check
        _
      $region10: #{_q_overlap_patch_embed_impl.1} parent=5 // pred_check_branch
        %135 = sbr.rel (%p132) target = $region12
      $region11: #{_q_overlap_patch_embed_impl.1} parent=5 // pred_region
        %s136 = ssub.s32 %s12, 1
        // Predicated region
        $region13: #{_q_overlap_patch_embed_impl.1} parent=11 // pred_check
          %p137 = pneg %p73
        $region14: #{_q_overlap_patch_embed_impl.1} parent=11 // pred_check_branch
          %139 = sbr.rel (%p137) target = $region16
        $region15: #{_q_overlap_patch_embed_impl.1} parent=11 // pred_region
          _
        $region16: #{_q_overlap_patch_embed_impl.1} parent=11 // pred_fallthru
          _
        // Predicated region
        $region17: #{_q_overlap_patch_embed_impl.1} parent=11 // pred_check
          %p140 = pneg %p94
        $region18: #{_q_overlap_patch_embed_impl.1} parent=11 // pred_check_branch
          %142 = sbr.rel (%p140) target = $region20
        $region19: #{_q_overlap_patch_embed_impl.1} parent=11 // pred_region
          _
        $region20: #{_q_overlap_patch_embed_impl.1} parent=11 // pred_fallthru
          _
      $region12: #{_q_overlap_patch_embed_impl.1} parent=5 // pred_fallthru
        _
      %p143 = scmp.lt.s32.totalorder %s12, 2
      // Predicated region
      $region21: #{_q_overlap_patch_embed_impl.1} parent=5 // pred_check
        %p144 = pneg %p143
      $region22: #{_q_overlap_patch_embed_impl.1} parent=5 // pred_check_branch
        %146 = sbr.rel (%p144) target = $region24
      $region23: #{_q_overlap_patch_embed_impl.1} parent=5 // pred_region
        // Predicated region
        $region25: #{_q_overlap_patch_embed_impl.1} parent=23 // pred_check
          %p147 = pneg %p46
        $region26: #{_q_overlap_patch_embed_impl.1} parent=23 // pred_check_branch
          %149 = sbr.rel (%p147) target = $region28
        $region27: #{_q_overlap_patch_embed_impl.1} parent=23 // pred_region
          %s150 = smul.u32 2, %s20
          %p151 = scmp.lt.s32.totalorder %s19, 1
          %s152 = scalar_select %p151, %s19, 1
          %p153 = scmp.lt.s32.totalorder %s150, 1
          %s154 = scalar_select %p153, %s150, 1
          %s155 = smul.addr %s154, 2
          %s156 = smul.addr %s152, 4
          %s157 = sadd.s32 %s155, %s156
          %s158 = smul.addr %s157, 4
          %s159 = scalar_lea.vmem %s0, %s158
          %s160 = smul.u32 2, %s20
        $region28: #{_q_overlap_patch_embed_impl.1} parent=23 // pred_fallthru
          _
      $region24: #{_q_overlap_patch_embed_impl.1} parent=5 // pred_fallthru
        _
      %p161 = scmp.le.s32.totalorder 1, %s12
      %p162 = scmp.lt.s32.totalorder %s12, 3
      %p163 = pnand %p161, %p162
      %p164 = pneg %p163
      // Predicated region
      $region29: #{_q_overlap_patch_embed_impl.1} parent=5 // pred_check
        _
      $region30: #{_q_overlap_patch_embed_impl.1} parent=5 // pred_check_branch
        %166 = sbr.rel (%p163) target = $region32
      $region31: #{_q_overlap_patch_embed_impl.1} parent=5 // pred_region
        %s167 = ssub.s32 %s12, 1
        %s168 = smul.u32 2, %s22
        %p169 = scmp.lt.s32.totalorder %s21, 1
        %s170 = scalar_select %p169, %s21, 1
        %p171 = scmp.lt.s32.totalorder %s168, 1
        %s172 = scalar_select %p171, %s168, 1
        %s173 = smul.addr %s172, 2
        %s174 = smul.addr %s170, 4
        %s175 = sadd.s32 %s173, %s174
        %s176 = smul.addr %s175, 4
        %s177 = scalar_lea.vmem %s0, %s176
        %p178 = pneg %p52
        %p179 = pneg %p49
        %p180 = pneg %p73
        %p181 = pneg %p70
        %p182 = pneg %p94
        %p183 = pneg %p91
        %p184 = pneg %p122
        %p185 = pneg %p119
        %s186 = sand.u32 %s109, 1
        %s187 = scalar_lea.sflag [#allocation3], %s186
        %s188 = sand.u32 %s109, 1
        %s189 = smul.addr %s188, 16
        %s190 = scalar_lea.vmem [#allocation2], %s189
        %s191 = smul.u32 2, %s22
        %p192 = scmp.lt.s32.totalorder %s21, 1
        %s193 = scalar_select %p192, %s21, 1
        %p194 = scmp.lt.s32.totalorder %s191, 1
        %s195 = scalar_select %p194, %s191, 1
        %s196 = smul.addr %s195, 2
        %s197 = smul.addr %s193, 4
        %s198 = sadd.s32 %s196, %s197
        %s199 = smul.addr %s198, 4
        %s200 = scalar_lea.vmem %s0, %s199
        %s201 = smul.u32 2, %s22
        %s202 = smul.u32 2, %s22
        %v203 = vld [vmem:[%s200] sm:$0xff]
        %v204 = vld [vmem:[%s200 + $0x8] sm:$0xff]
        %v205 = vunpack.c.l.b16 %v203
        %v206 = vunpack.c.h.b16 %v203
        %v207 = vunpack.c.l.b16 %v204
        %v208 = vunpack.c.h.b16 %v204
        %v209 = vcvt.s32.f32 %v205
        %v210 = vcvt.s32.f32 %v206
        %v211 = vcvt.s32.f32 %v207
        %v212 = vcvt.s32.f32 %v208
        %v213 = vld [vmem:[%s1] sm:$0xff]
        %v214 = vld [vmem:[%s1 + $0x8] sm:$0xff]
        %v215 = vld [vmem:[%s1 + $0x10] sm:$0xff]
        %v216 = vld [vmem:[%s1 + $0x18] sm:$0xff]
        %v217 = vld [vmem:[%s1 + $0x20] sm:$0xff]
        %v218 = vld [vmem:[%s1 + $0x28] sm:$0xff]
        %v219 = vld [vmem:[%s1 + $0x30] sm:$0xff]
        %v220 = vld [vmem:[%s1 + $0x38] sm:$0xff]
        %v221 = vld [vmem:[%s1 + $0x40] sm:$0xff]
        %v222 = vld [vmem:[%s1 + $0x48] sm:$0xff]
        %v223 = vld [vmem:[%s1 + $0x50] sm:$0xff]
        %v224 = vld [vmem:[%s1 + $0x58] sm:$0xff]
        %v225 = vld [vmem:[%s1 + $0x60] sm:$0xff]
        %v226 = vld [vmem:[%s1 + $0x68] sm:$0xff]
        %v227 = vld [vmem:[%s1 + $0x70] sm:$0xff]
        %v228 = vld [vmem:[%s1 + $0x78] sm:$0xff]
        %v229 = vld [vmem:[%s1 + $0x80] sm:$0xff]
        %v230 = vld [vmem:[%s1 + $0x88] sm:$0xff]
        %v231 = vld [vmem:[%s1 + $0x90] sm:$0xff]
        %v232 = vld [vmem:[%s1 + $0x98] sm:$0xff]
        %v233 = vld [vmem:[%s1 + $0xa0] sm:$0xff]
        %v234 = vld [vmem:[%s1 + $0xa8] sm:$0xff]
        %v235 = vld [vmem:[%s1 + $0xb0] sm:$0xff]
        %v236 = vld [vmem:[%s1 + $0xb8] sm:$0xff]
        %v237 = vld [vmem:[%s1 + $0xc0] sm:$0xff]
        %v238 = vld [vmem:[%s1 + $0xc8] sm:$0xff]
        %v239 = vld [vmem:[%s1 + $0xd0] sm:$0xff]
        %v240 = vld [vmem:[%s1 + $0xd8] sm:$0xff]
        %v241 = vld [vmem:[%s1 + $0xe0] sm:$0xff]
        %v242 = vld [vmem:[%s1 + $0xe8] sm:$0xff]
        %v243 = vld [vmem:[%s1 + $0xf0] sm:$0xff]
        %v244 = vld [vmem:[%s1 + $0xf8] sm:$0xff]
        %v245 = vld [vmem:[%s2] sm:$0x1]
        %v247 = vlaneseq
        %v248 = vshrl.u32 %v247, 7
        %v249 = vsub.s32 0, %v248
        %v250 = vrot.slane %v245, %v249
        %252 = vmatprep.subr.mxu0 0.0
        %253 = vmatpush1.msra.mxu0 %v213
        %254 = vmatprep.subr.mxu0 0.0
        %255 = vmatpush1.msra.mxu0 %v214
        %256 = vmatprep.subr.mxu0 0.0
        %257 = vmatpush1.msra.mxu0 %v215
        %258 = vmatprep.subr.mxu0 0.0
        %259 = vmatpush1.msra.mxu0 %v216
        %260 = vmatprep.subr.mxu0 0.0
        %261 = vmatpush1.msra.mxu0 %v217
        %262 = vmatprep.subr.mxu0 0.0
        %263 = vmatpush1.msra.mxu0 %v218
        %264 = vmatprep.subr.mxu0 0.0
        %265 = vmatpush1.msra.mxu0 %v219
        %266 = vmatprep.subr.mxu0 0.0
        %267 = vmatpush1.msra.mxu0 %v220
        %268 = vmatprep.subr.mxu0 0.0
        %269 = vmatpush1.msra.mxu0 %v221
        %270 = vmatprep.subr.mxu0 0.0
        %271 = vmatpush1.msra.mxu0 %v222
        %272 = vmatprep.subr.mxu0 0.0
        %273 = vmatpush1.msra.mxu0 %v223
        %274 = vmatprep.subr.mxu0 0.0
        %275 = vmatpush1.msra.mxu0 %v224
        %276 = vmatprep.subr.mxu0 0.0
        %277 = vmatpush1.msra.mxu0 %v225
        %278 = vmatprep.subr.mxu0 0.0
        %279 = vmatpush1.msra.mxu0 %v226
        %280 = vmatprep.subr.mxu0 0.0
        %281 = vmatpush1.msra.mxu0 %v227
        %282 = vmatprep.subr.mxu0 0.0
        %283 = vmatpush1.msra.mxu0 %v228
        %284 = vmatprep.subr.mxu0 0.0
        %285 = vmatpush1.msra.mxu0 %v229
        %286 = vmatprep.subr.mxu0 0.0
        %287 = vmatpush1.msra.mxu0 %v230
        %288 = vmatprep.subr.mxu0 0.0
        %289 = vmatpush1.msra.mxu0 %v231
        %290 = vmatprep.subr.mxu0 0.0
        %291 = vmatpush1.msra.mxu0 %v232
        %292 = vmatprep.subr.mxu0 0.0
        %293 = vmatpush1.msra.mxu0 %v233
        %294 = vmatprep.subr.mxu0 0.0
        %295 = vmatpush1.msra.mxu0 %v234
        %296 = vmatprep.subr.mxu0 0.0
        %297 = vmatpush1.msra.mxu0 %v235
        %298 = vmatprep.subr.mxu0 0.0
        %299 = vmatpush1.msra.mxu0 %v236
        %300 = vmatprep.subr.mxu0 0.0
        %301 = vmatpush1.msra.mxu0 %v237
        %302 = vmatprep.subr.mxu0 0.0
        %303 = vmatpush1.msra.mxu0 %v238
        %304 = vmatprep.subr.mxu0 0.0
        %305 = vmatpush1.msra.mxu0 %v239
        %306 = vmatprep.subr.mxu0 0.0
        %307 = vmatpush1.msra.mxu0 %v240
        %308 = vmatprep.subr.mxu0 0.0
        %309 = vmatpush1.msra.mxu0 %v241
        %310 = vmatprep.subr.mxu0 0.0
        %311 = vmatpush1.msra.mxu0 %v242
        %312 = vmatprep.subr.mxu0 0.0
        %313 = vmatpush1.msra.mxu0 %v243
        %314 = vmatprep.subr.mxu0 0.0
        %315 = vmatpush1.msra.mxu0 %v244
        %316 = vmatprep.mubr.f32.mxu0 %v210
        %317 = vmatmul.mubr.f32.gmra.mrb[0].mxu0 %v209
        %v318 = vpop.f32.mrb[0].mxu0
        %v319 = vadd.f32 %v250, %v318
        %v320 = vpop.f32.mrb[0].mxu0
        %321 = vmatprep.mubr.f32.mxu0 %v212
        %322 = vmatmul.mubr.f32.gmra.mrb[0].mxu0 %v211
        %v323 = vpop.f32.mrb[0].mxu0
        %v324 = vadd.f32 %v250, %v323
        %v325 = vpop.f32.mrb[0].mxu0
        %326 = vdwg.mxu0
        %v327 = vmul.f32 %v319, 16.0
        %v328 = vmul.f32 %v324, 16.0
        %v329 = vround.ne.pseudo %v327
        %v330 = vround.ne.pseudo %v328
        %v331 = vmax.f32 %v329, -32768.0
        %v332 = vmax.f32 %v330, -32768.0
        %v333 = vmin.f32 %v331, 32767.0
        %v334 = vmin.f32 %v332, 32767.0
        %v335 = vrcp.pop 16.0
        %v336 = vmul.f32 %v333, %v335
        %v337 = vmul.f32 %v334, %v335
        %vm338 = vcmask 261120
        %339 = vst.msk [vmem:[%s190] sm:$0xff] %vm338, %v336
        %340 = vst.msk [vmem:[%s190 + $0x8] sm:$0xff] %vm338, %v337
        %s341 = sand.u32 %s109, 1
        %s342 = scalar_lea.sflag [#allocation3], %s341
        %s343 = sand.u32 %s109, 1
        %s344 = smul.addr %s343, 16
        %s345 = scalar_lea.vmem [#allocation2], %s344
        // Predicated region
        $region33: #{_q_overlap_patch_embed_impl.1} parent=31 // pred_check
          %p346 = pneg %p119
        $region34: #{_q_overlap_patch_embed_impl.1} parent=31 // pred_check_branch
          %348 = sbr.rel (%p346) target = $region36
        $region35: #{_q_overlap_patch_embed_impl.1} parent=31 // pred_region
          %s349 = smul.u32 2, %s22
          %s351 = ssub.s32 256, 256
          %352 = vsyncadd %s342, %s351
          %s353 = smul.addr %s21, 2
          %s354 = sadd.s32 %s349, %s353
          %s355 = smul.addr %s354, 128
          %s356 = scalar_lea.hbm %s3, %s355
          %s357 = sshll.u32 %s345, 4
          %s358 = int_to_ptr.vmem [resolvable:$true] %s357
          %363 = dma.vmem_to_hbm [thread:$0]  %s358, 256, %s356, %s342, 128, 128, 8
        $region36: #{_q_overlap_patch_embed_impl.1} parent=31 // pred_fallthru
          _
      $region32: #{_q_overlap_patch_embed_impl.1} parent=5 // pred_fallthru
        _
      %p364 = scmp.le.s32.totalorder 2, %s12
      // Predicated region
      $region37: #{_q_overlap_patch_embed_impl.1} parent=5 // pred_check
        %p365 = pneg %p364
      $region38: #{_q_overlap_patch_embed_impl.1} parent=5 // pred_check_branch
        %367 = sbr.rel (%p365) target = $region40
      $region39: #{_q_overlap_patch_embed_impl.1} parent=5 // pred_region
        %s368 = ssub.s32 %s12, 2
        // Predicated region
        $region41: #{_q_overlap_patch_embed_impl.1} parent=39 // pred_check
          %p369 = pneg %p125
        $region42: #{_q_overlap_patch_embed_impl.1} parent=39 // pred_check_branch
          %371 = sbr.rel (%p369) target = $region44
        $region43: #{_q_overlap_patch_embed_impl.1} parent=39 // pred_region
          %s372 = sand.u32 %s110, 1
          %s373 = scalar_lea.sflag [#allocation3], %s372
          %s374 = sand.u32 %s110, 1
          %s375 = smul.addr %s374, 16
          %s376 = scalar_lea.vmem [#allocation2], %s375
          %377 = dma.done %s373, 256
        $region44: #{_q_overlap_patch_embed_impl.1} parent=39 // pred_fallthru
          _
      $region40: #{_q_overlap_patch_embed_impl.1} parent=5 // pred_fallthru
        _
    $region6: #{_q_overlap_patch_embed_impl.1} parent=1 // loop_footer
      %s16 = sadd.s32 1, %s12
    $region7: #{_q_overlap_patch_embed_impl.1} parent=1 // loop_footer_branch
      %11 = sbr.rel target = $region3
    $region8: #{_q_overlap_patch_embed_impl.1} parent=1 // loop_exit
      _
    %378 = vsyncpa [#allocation3], 1
    %s379 = scalar_lea.sflag [#allocation3], 1
    %380 = vsyncpa %s379, 1

</llo_original>
